<compile_context>
chip_gen: v6e
topology: v6e:2x2x1
jax: 0.10.0
libtpu: 0.0.40
codegen_flags: <defaults>
</compile_context>

<pallas_src>
import jax
import jax.numpy as jnp
from jax import lax
from jax.experimental import pallas as pl
from jax.experimental.pallas import tpu as pltpu

IN_FEATURES = 128
OUT_FEATURES = 1
# Rows per batch tile: 8192 rows * 128 feats * 4 B = 4 MiB per x block,
# 8 MiB double-buffered — safe under every generation's scoped-VMEM default.
MAX_TB = 8192


def _round_up(n, m):
    return ((n + m - 1) // m) * m


def _choose_tile(batch, max_tb):
    """Pick the batch-tile size TB (rows per grid step)."""
    if batch <= 128:
        # Single block whose dims equal the full array dims.
        return batch
    # Aim for >=2 grid steps so both v7x TensorCores get work and the x DMAs
    # overlap compute, but never exceed the VMEM budget (max_tb).
    target_tiles = max(2, pl.cdiv(batch, max_tb))
    tb = _round_up(pl.cdiv(batch, target_tiles), 128)  # lane-dim multiple
    return min(tb, max_tb)


def _linear_kernel(x_ref, w_ref, b_ref, o_ref):
    # x_ref: (TB, 128) VMEM (streamed), w_ref: (1, 128) VMEM (resident),
    # b_ref: (1,) SMEM scalar, o_ref: (1, TB) VMEM (lane-dense output row).
    # Contract the 128-feature axis on the MXU: (1,128) x (TB,128)^T -> (1,TB).
    acc = lax.dot_general(
        w_ref[...],
        x_ref[...],
        dimension_numbers=(((1,), (1,)), ((), ())),
        preferred_element_type=jnp.float32,
    )
    o_ref[...] = (acc + b_ref[0]).astype(o_ref.dtype)


def linear_layer_forward(x, weight, bias, *, max_tb=MAX_TB):
    """Pallas equivalent of LinearLayer.forward (fc1 part).

    Args:
      x:      (B, 128) float32 — output of the (identity) pretrained model.
      weight: (1, 128) float32 — PyTorch nn.Linear weight layout.
      bias:   (1,)     float32 — PyTorch nn.Linear bias.

    Returns:
      (B, 1) float32
    """
    B = x.shape[0]
    TB = _choose_tile(B, max_tb)
    num_tiles = pl.cdiv(B, TB)

    cost = pl.CostEstimate(
        flops=2 * B * IN_FEATURES,
        transcendentals=0,
        bytes_accessed=B * IN_FEATURES * 4 + B * 4 + IN_FEATURES * 4 + 4,
    )

    out = pl.pallas_call(
        _linear_kernel,
        out_shape=jax.ShapeDtypeStruct((OUT_FEATURES, B), jnp.float32),
        grid=(num_tiles,),
        in_specs=[
            # x streams through VMEM one batch tile at a time (double-buffered);
            # the last (ragged) block is handled by Pallas boundary masking.
            pl.BlockSpec((TB, IN_FEATURES), lambda i: (i, 0)),
            # weight stays VMEM-resident across all grid steps.
            pl.BlockSpec((OUT_FEATURES, IN_FEATURES), lambda i: (0, 0)),
            # bias is a scalar in SMEM.
            pl.BlockSpec(memory_space=pltpu.MemorySpace.SMEM),
        ],
        # Lane-dense (1, TB) output row per tile.
        out_specs=pl.BlockSpec((OUT_FEATURES, TB), lambda i: (0, i)),
        compiler_params=pltpu.CompilerParams(
            dimension_semantics=("parallel",),  # batch tiles shard across TCs
        ),
        cost_estimate=cost,
    )(x, weight, bias)

    # Layout plumbing only: (1, B) row -> (B, 1) column.
    return out.reshape(B, OUT_FEATURES)


def reference_forward(x, weight, bias):
    return x @ weight.T + bias


if __name__ == "__main__":
    key = jax.random.PRNGKey(0)
    kx, kw, kb, kx2 = jax.random.split(key, 4)

    # Deterministic init mimicking nn.Linear default U[-1/sqrt(128), 1/sqrt(128)].
    bound = 1.0 / jnp.sqrt(jnp.float32(IN_FEATURES))
    weight = jax.random.uniform(
        kw, (OUT_FEATURES, IN_FEATURES), jnp.float32, -bound, bound
    )
    bias = jax.random.uniform(kb, (OUT_FEATURES,), jnp.float32, -bound, bound)

    # Small smoke test: (B, 128) features from the (identity) pretrained model.
    B = 8
    x = jax.random.normal(kx, (B, IN_FEATURES), jnp.float32)
    out = jax.block_until_ready(linear_layer_forward(x, weight, bias))
    ref = reference_forward(x, weight, bias)
    assert out.shape == (B, OUT_FEATURES), out.shape
    assert jnp.allclose(out, ref, atol=1e-5, rtol=1e-5), "mismatch vs reference"

    # Also exercise the multi-tile, ragged-boundary path (no wrapper padding).
    B2 = 300
    x2 = jax.random.normal(kx2, (B2, IN_FEATURES), jnp.float32)
    out2 = jax.block_until_ready(linear_layer_forward(x2, weight, bias))
    ref2 = reference_forward(x2, weight, bias)
    assert out2.shape == (B2, OUT_FEATURES), out2.shape
    assert jnp.allclose(out2, ref2, atol=1e-5, rtol=1e-5), "mismatch vs reference"

    print("KERNEL_OK")
</pallas_src>

<mosaic_0001>
module attributes {stable_mosaic.version = 11 : i64} {
  func.func @_linear_kernel(%arg0: i32, %arg1: memref<8x128xf32, #tpu.memory_space<vmem>>, %arg2: memref<1x128xf32, #tpu.memory_space<vmem>>, %arg3: memref<1xf32, #tpu.memory_space<smem>>, %arg4: memref<1x8xf32, #tpu.memory_space<vmem>>) attributes {dimension_semantics = [#tpu.dimension_semantics<parallel>], iteration_bounds = array<i64: 1>, scalar_prefetch = 0 : i64, scratch_operands = 0 : i64, tpu.core_type = #tpu.core_type<tc>, window_params = [{transform_indices = @transform_0, window_bounds = array<i64: 8, 128>}, {pipeline_mode = #tpu.pipeline_mode<synchronous>, transform_indices = @transform_1, window_bounds = array<i64: 1, 128>}, {transform_indices = @transform_2, window_bounds = array<i64: 1>}, {transform_indices = @transform_3, window_bounds = array<i64: 1, 8>}]} {
    %c0 = arith.constant 0 : index
    %c0_0 = arith.constant 0 : index
    %0 = vector.load %arg2[%c0, %c0_0] : memref<1x128xf32, #tpu.memory_space<vmem>>, vector<1x128xf32>
    %c0_1 = arith.constant 0 : index
    %c0_2 = arith.constant 0 : index
    %1 = vector.load %arg1[%c0_1, %c0_2] : memref<8x128xf32, #tpu.memory_space<vmem>>, vector<8x128xf32>
    %cst = arith.constant dense<0.000000e+00> : vector<1x8xf32>
    %2 = tpu.matmul %0, %1, %cst {dimension_numbers = #tpu.dot_dimension_numbers<[1], [1], [0], [0], [0, 0, 1, 0], [], []>} : vector<1x128xf32>, vector<8x128xf32>, vector<1x8xf32> -> vector<1x8xf32>
    %c0_3 = arith.constant 0 : index
    %3 = memref.load %arg3[%c0_3] : memref<1xf32, #tpu.memory_space<smem>>
    %4 = vector.broadcast %3 : f32 to vector<1x8xf32>
    %5 = arith.addf %2, %4 : vector<1x8xf32>
    %c0_4 = arith.constant 0 : index
    %c0_5 = arith.constant 0 : index
    %6 = vector.load %arg4[%c0_4, %c0_5] : memref<1x8xf32, #tpu.memory_space<vmem>>, vector<1x8xf32>
    tpu.vector_store %arg4[%c0_4, %c0_5], %5 {strides = array<i32>} : memref<1x8xf32, #tpu.memory_space<vmem>>, vector<1x8xf32>,
    return
  }
  func.func @transform_0(%arg0: i32) -> (i32, i32) {
    %c0_i32 = arith.constant 0 : i32
    %c0_i32_0 = arith.constant 0 : i32
    return %arg0, %c0_i32 : i32, i32
  }
  func.func @transform_1(%arg0: i32) -> (i32, i32) {
    %c0_i32 = arith.constant 0 : i32
    %c0_i32_0 = arith.constant 0 : i32
    %c0_i32_1 = arith.constant 0 : i32
    return %c0_i32, %c0_i32_0 : i32, i32
  }
  func.func @transform_2(%arg0: i32) -> i32 {
    %c0_i32 = arith.constant 0 : i32
    %c0_i32_0 = arith.constant 0 : i32
    return %c0_i32 : i32
  }
  func.func @transform_3(%arg0: i32) -> (i32, i32) {
    %c0_i32 = arith.constant 0 : i32
    %c0_i32_0 = arith.constant 0 : i32
    return %c0_i32, %arg0 : i32, i32
  }
}

</mosaic_0001>

<llo_original>
// kernel: tpu_custom_call.1
$region0: #{tpu_custom_call.1}
  #allocation0 [shape = 'u32[]', space=smem, size = 0x4, offset = 0x4, fixed_abs, tag = 'smem constant byte address 0x4 - core index']
  #allocation1 [shape = 'u32[144,128]{1,0:T(1,128)}', space=vmem, size = 0x12000, scoped, tag = 'internal scratch']
  #allocation2 [shape = 'f32[1]{0:T(128)S(6)}', space=smem, size = 0x200, scoped, tag = 'scoped memory for tpu_custom_call.1']
  %s0 = inlined_call_operand.hbm [shape: f32[8,128], index: 0, kind: input, shape index: {}]
  %s1 = inlined_call_operand.vmem [shape: f32[1,128], index: 1, kind: input, shape index: {}]
  %s2 = inlined_call_operand.<no memory space> [shape: f32[1], index: 2, kind: input, shape index: {}]
  %s3 = inlined_call_operand.hbm [shape: f32[1,8], index: 3, kind: output, shape index: {}]
  %s4 = sld [smem:[#allocation0]]
  $region26: #{tpu_custom_call.1} parent=0
    _
  %s6 = ssub.s32 1, %s4
  %s7 = scalar_select 0, %s6, %s4
  %8 = sst [smem:[#allocation2]] %s2
  $region1: #{tpu_custom_call.1} parent=0
    #allocation3 [shape = 'u8[4096]{0}', space=vmem, size = 0x1000, scoped, tag = 'input window, operand 0, single buffered']
    #allocation4 [shape = 's32[1]{0}', space=sflag, size = 0x4, scoped, tag = 'scoped memory for tpu_custom_call.1']
    #allocation5 [shape = 's32[1]{0}', space=sflag, size = 0x4, scoped, tag = 'scoped memory for tpu_custom_call.1']
    #allocation6 [shape = 'u8[512]{0}', space=vmem, size = 0x400, scoped, tag = 'output window, operand 0, single buffered']
    %9 = vsyncpa [#allocation4], 0
    %10 = vsyncpa [#allocation5], 0
    // Predicated region
    $region2: #{tpu_custom_call.1} parent=1 // pred_check
      _
    $region3: #{tpu_custom_call.1} parent=1 // pred_check_branch
      %12 = sbr.rel (0) target = $region5
    $region4: #{tpu_custom_call.1} parent=1 // pred_region
      %s14 = ssub.s32 128, 128
      %15 = vsyncadd [#allocation4], %s14
      %s17 = sshll.u32 [#allocation3], 4
      %s18 = int_to_ptr.vmem [resolvable:$true] %s17
      %20 = dma.hbm_to_vmem [thread:$0]  %s0, 128, %s18, [#allocation4]
    $region5: #{tpu_custom_call.1} parent=1 // pred_fallthru
      _
    // Predicated region
    $region6: #{tpu_custom_call.1} parent=1 // pred_check
      _
    $region7: #{tpu_custom_call.1} parent=1 // pred_check_branch
      %22 = sbr.rel (0) target = $region9
    $region8: #{tpu_custom_call.1} parent=1 // pred_region
      _
    $region9: #{tpu_custom_call.1} parent=1 // pred_fallthru
      _
    // Predicated region
    $region10: #{tpu_custom_call.1} parent=1 // pred_check
      _
    $region11: #{tpu_custom_call.1} parent=1 // pred_check_branch
      %24 = sbr.rel (0) target = $region13
    $region12: #{tpu_custom_call.1} parent=1 // pred_region
      _
    $region13: #{tpu_custom_call.1} parent=1 // pred_fallthru
      _
    // Predicated region
    $region14: #{tpu_custom_call.1} parent=1 // pred_check
      _
    $region15: #{tpu_custom_call.1} parent=1 // pred_check_branch
      %26 = sbr.rel (0) target = $region17
    $region16: #{tpu_custom_call.1} parent=1 // pred_region
      %27 = dma.done [#allocation4], 128
    $region17: #{tpu_custom_call.1} parent=1 // pred_fallthru
      _
    %v28 = vld [vmem:[%s1] sm:$0x1]
    %v29 = vld [vmem:[#allocation3] sm:$0xff]
    %s30 = sld [smem:[#allocation2]]
    %v31 = vstv %s30
    %32 = vmatprep.subr.mxu0 0.0
    %33 = vmatpush1.xpose.msra.mxu0 0.0
    %34 = vmatprep.subr.mxu0 0.0
    %35 = vmatpush1.xpose.msra.mxu0 0.0
    %36 = vmatprep.subr.mxu0 0.0
    %37 = vmatpush1.xpose.msra.mxu0 0.0
    %38 = vmatprep.subr.mxu0 0.0
    %39 = vmatpush1.xpose.msra.mxu0 0.0
    %40 = vmatprep.subr.mxu0 0.0
    %41 = vmatpush1.xpose.msra.mxu0 0.0
    %42 = vmatprep.subr.mxu0 0.0
    %43 = vmatpush1.xpose.msra.mxu0 0.0
    %44 = vmatprep.subr.mxu0 0.0
    %45 = vmatpush1.xpose.msra.mxu0 0.0
    %46 = vmatprep.subr.mxu0 0.0
    %47 = vmatpush1.xpose.msra.mxu0 0.0
    %48 = vmatprep.subr.mxu0 0.0
    %49 = vmatpush1.xpose.msra.mxu0 0.0
    %50 = vmatprep.subr.mxu0 0.0
    %51 = vmatpush1.xpose.msra.mxu0 0.0
    %52 = vmatprep.subr.mxu0 0.0
    %53 = vmatpush1.xpose.msra.mxu0 0.0
    %54 = vmatprep.subr.mxu0 0.0
    %55 = vmatpush1.xpose.msra.mxu0 0.0
    %56 = vmatprep.subr.mxu0 0.0
    %57 = vmatpush1.xpose.msra.mxu0 0.0
    %58 = vmatprep.subr.mxu0 0.0
    %59 = vmatpush1.xpose.msra.mxu0 0.0
    %60 = vmatprep.subr.mxu0 0.0
    %61 = vmatpush1.xpose.msra.mxu0 0.0
    %62 = vmatprep.subr.mxu0 0.0
    %63 = vmatpush1.xpose.msra.mxu0 %v29
    %64 = vmatprep.subr.mxu0 0.0
    %65 = vmatpush2.xpose.msra.mxu0 0.0
    %66 = vmatprep.subr.mxu0 0.0
    %67 = vmatpush2.xpose.msra.mxu0 0.0
    %68 = vmatprep.subr.mxu0 0.0
    %69 = vmatpush2.xpose.msra.mxu0 0.0
    %70 = vmatprep.subr.mxu0 0.0
    %71 = vmatpush2.xpose.msra.mxu0 0.0
    %72 = vmatprep.subr.mxu0 0.0
    %73 = vmatpush2.xpose.msra.mxu0 0.0
    %74 = vmatprep.subr.mxu0 0.0
    %75 = vmatpush2.xpose.msra.mxu0 0.0
    %76 = vmatprep.subr.mxu0 0.0
    %77 = vmatpush2.xpose.msra.mxu0 0.0
    %78 = vmatprep.subr.mxu0 0.0
    %79 = vmatpush2.xpose.msra.mxu0 0.0
    %80 = vmatprep.subr.mxu0 0.0
    %81 = vmatpush2.xpose.msra.mxu0 0.0
    %82 = vmatprep.subr.mxu0 0.0
    %83 = vmatpush2.xpose.msra.mxu0 0.0
    %84 = vmatprep.subr.mxu0 0.0
    %85 = vmatpush2.xpose.msra.mxu0 0.0
    %86 = vmatprep.subr.mxu0 0.0
    %87 = vmatpush2.xpose.msra.mxu0 0.0
    %88 = vmatprep.subr.mxu0 0.0
    %89 = vmatpush2.xpose.msra.mxu0 0.0
    %90 = vmatprep.subr.mxu0 0.0
    %91 = vmatpush2.xpose.msra.mxu0 0.0
    %92 = vmatprep.subr.mxu0 0.0
    %93 = vmatpush2.xpose.msra.mxu0 0.0
    %94 = vmatprep.subr.mxu0 0.0
    %95 = vmatpush2.xpose.msra.mxu0 0.0
    %96 = vmatprep.mubr.f32.mxu0 0.0
    %97 = vmatmul.mubr.f32.gmra.mxu0 %v28
    %v98 = vpop.f32.mrf.mxu0
    %v99 = vadd.f32 %v31, %v98
    %v100 = vpop.f32.mrf.mxu0
    %101 = vdwg.mxu0
    %vm102 = vcmask 57344
    %103 = vst.msk [vmem:[#allocation6] sm:$0x1] %vm102, %v99
    // Predicated region
    $region18: #{tpu_custom_call.1} parent=1 // pred_check
      _
    $region19: #{tpu_custom_call.1} parent=1 // pred_check_branch
      %105 = sbr.rel (0) target = $region21
    $region20: #{tpu_custom_call.1} parent=1 // pred_region
      %s107 = ssub.s32 16, 16
      %108 = vsyncadd [#allocation5], %s107
      %s110 = sshll.u32 [#allocation6], 4
      %s111 = int_to_ptr.vmem [resolvable:$true] %s110
      %113 = dma.vmem_to_hbm [thread:$0]  %s111, 16, %s3, [#allocation5]
    $region21: #{tpu_custom_call.1} parent=1 // pred_fallthru
      _
    // Predicated region
    $region22: #{tpu_custom_call.1} parent=1 // pred_check
      _
    $region23: #{tpu_custom_call.1} parent=1 // pred_check_branch
      %115 = sbr.rel (0) target = $region25
    $region24: #{tpu_custom_call.1} parent=1 // pred_region
      %116 = dma.done [#allocation5], 16
    $region25: #{tpu_custom_call.1} parent=1 // pred_fallthru
      _
    %117 = vsyncpa [#allocation4], 1
    %118 = vsyncpa [#allocation5], 1

</llo_original>
